<compile_context>
chip_gen: v7x
topology: tpu7x:2x2x1
jax: 0.10.0
libtpu: 0.0.40
codegen_flags: <defaults>
</compile_context>

<pallas_src>
import functools

import jax
import jax.numpy as jnp
from jax.experimental import pallas as pl
from jax.experimental.pallas import tpu as pltpu


def _round_up(x, m):
    return ((x + m - 1) // m) * m


# ----------------------------------------------------------------------------
# Fused Pallas kernel: full encoder + decoder for one batch tile
# ----------------------------------------------------------------------------
def _make_fused_kernel(n_enc, n_dec):
    """Kernel over refs: x, (w0,b0, w1,b1, ...), enc_out, dec_out."""
    n_layers = n_enc + n_dec

    def kernel(*refs):
        x_ref = refs[0]
        wb_refs = refs[1 : 1 + 2 * n_layers]
        enc_ref = refs[1 + 2 * n_layers]
        dec_ref = refs[2 + 2 * n_layers]

        # Upcast once: all math in f32 regardless of the HBM wire dtype.
        h = x_ref[...].astype(jnp.float32)
        for li in range(n_layers):
            w = wb_refs[2 * li][...]       # (Din_l, Dout_l), f32
            b = wb_refs[2 * li + 1][...]   # (1, Dout_l)   -> broadcasts over rows
            h = jnp.tanh(
                jnp.dot(h, w, preferred_element_type=jnp.float32) + b
            )
            if li == n_enc - 1:
                enc_ref[...] = h.astype(enc_ref.dtype)
        dec_ref[...] = h.astype(dec_ref.dtype)

    return kernel


# ----------------------------------------------------------------------------
# Parameter construction (deterministic, PyTorch-Linear-style uniform init)
# ----------------------------------------------------------------------------
def _init_linear(key, fan_in, fan_out):
    kw, kb = jax.random.split(key)
    bound = 1.0 / jnp.sqrt(fan_in)
    # stored as (in, out) == W^T of the PyTorch layer; bias stored (1, out)
    w = jax.random.uniform(kw, (fan_in, fan_out), jnp.float32, -bound, bound)
    b = jax.random.uniform(kb, (1, fan_out), jnp.float32, -bound, bound)
    return w, b


def make_autoencoder_params(key, input_size, hidden_sizes):
    """Mirrors ClassicAutoencoder.__init__ layer structure."""
    enc_dims = [input_size] + list(hidden_sizes)
    dec_dims = list(hidden_sizes)[::-1] + [input_size]
    params = {"encoder": [], "decoder": []}
    for i in range(len(enc_dims) - 1):
        key, sub = jax.random.split(key)
        params["encoder"].append(_init_linear(sub, enc_dims[i], enc_dims[i + 1]))
    for i in range(len(dec_dims) - 1):
        key, sub = jax.random.split(key)
        params["decoder"].append(_init_linear(sub, dec_dims[i], dec_dims[i + 1]))
    return params


# ----------------------------------------------------------------------------
# Forward pass: one fused pallas_call for the whole encoder+decoder
# ----------------------------------------------------------------------------
@functools.partial(jax.jit, static_argnames=("tile_b", "io_dtype"))
def classic_autoencoder_forward(params, x, tile_b=512, io_dtype=jnp.float32):
    enc_layers = list(params["encoder"])
    dec_layers = list(params["decoder"])
    n_enc, n_dec = len(enc_layers), len(dec_layers)
    layers = enc_layers + dec_layers

    B, Din = x.shape
    enc_out_dim = enc_layers[-1][0].shape[1]
    dec_out_dim = dec_layers[-1][0].shape[1]

    x = x.astype(io_dtype)

    # --- Batch tile selection -------------------------------------------
    assert tile_b % 8 == 0, "batch tile must be a multiple of 8 (sublane)"
    TB = min(tile_b, _round_up(B, 8))
    # Keep >= 2 grid steps when B allows so both v7x TensorCores get work.
    TB = min(TB, max(8, _round_up(pl.cdiv(B, 2), 8)))
    grid = (pl.cdiv(B, TB),)   # ragged last tile handled by Pallas masking

    # --- VMEM budget (generation-safe: clamp to v7x's 64 MiB) ------------
    io_bytes = jnp.dtype(io_dtype).itemsize
    w_bytes = sum(int(w.size) * 4 + int(b.size) * 4 for w, b in layers)
    widest = max([Din, enc_out_dim, dec_out_dim] + [w.shape[1] for w, _ in layers])
    needed = (2 * TB * (Din + enc_out_dim + dec_out_dim) * io_bytes  # dbl-buffered I/O
              + 2 * w_bytes                                          # weights/biases
              + 4 * TB * widest * 4)                                 # activation temps
    vmem_limit_bytes = int(min(max(2 * needed, 32 * 1024 * 1024),
                               64 * 1024 * 1024))

    # --- Specs ------------------------------------------------------------
    wb_inputs = []
    wb_specs = []
    for (w, b) in layers:
        wb_inputs.extend([w, b])
        wb_specs.append(pl.BlockSpec(w.shape, lambda i: (0, 0)))
        wb_specs.append(pl.BlockSpec(b.shape, lambda i: (0, 0)))

    in_specs = [pl.BlockSpec((TB, Din), lambda i: (i, 0))] + wb_specs
    out_specs = (
        pl.BlockSpec((TB, enc_out_dim), lambda i: (i, 0)),
        pl.BlockSpec((TB, dec_out_dim), lambda i: (i, 0)),
    )
    out_shape = (
        jax.ShapeDtypeStruct((B, enc_out_dim), io_dtype),
        jax.ShapeDtypeStruct((B, dec_out_dim), io_dtype),
    )

    encoded, decoded = pl.pallas_call(
        _make_fused_kernel(n_enc, n_dec),
        out_shape=out_shape,
        grid_spec=pl.GridSpec(grid=grid, in_specs=in_specs, out_specs=out_specs),
        compiler_params=pltpu.CompilerParams(
            dimension_semantics=("parallel",),
            vmem_limit_bytes=vmem_limit_bytes,
        ),
    )(x, *wb_inputs)

    return encoded, decoded


# ----------------------------------------------------------------------------
# Pure-JAX reference (for correctness sanity check)
# ----------------------------------------------------------------------------
def reference_forward(params, x):
    h = x
    for w, b in params["encoder"]:
        h = jnp.tanh(h @ w + b)
    encoded = h
    for w, b in params["decoder"]:
        h = jnp.tanh(h @ w + b)
    return encoded, h


if __name__ == "__main__":
    key = jax.random.PRNGKey(0)
    k_param, k_x = jax.random.split(key)

    input_size = 64
    hidden_sizes = [32, 16]
    batch = 8

    params = make_autoencoder_params(k_param, input_size, hidden_sizes)
    x = jax.random.normal(k_x, (batch, input_size), jnp.float32)

    # 1) Small batch, single grid step, f32 I/O.
    encoded, decoded = classic_autoencoder_forward(params, x)
    jax.block_until_ready((encoded, decoded))
    ref_enc, ref_dec = reference_forward(params, x)
    assert encoded.shape == (batch, hidden_sizes[-1])
    assert decoded.shape == (batch, input_size)
    assert jnp.allclose(encoded, ref_enc, atol=1e-5, rtol=1e-5)
    assert jnp.allclose(decoded, ref_dec, atol=1e-5, rtol=1e-5)

    # 2) Larger batch: multi-step grid with a ragged last tile (no jnp.pad,
    #    no output slicing), f32 I/O.
    xb = jax.random.normal(k_x, (200, input_size), jnp.float32)
    enc_b, dec_b = classic_autoencoder_forward(params, xb)
    jax.block_until_ready((enc_b, dec_b))
    ref_enc_b, ref_dec_b = reference_forward(params, xb)
    assert enc_b.shape == (200, hidden_sizes[-1])
    assert dec_b.shape == (200, input_size)
    assert jnp.allclose(enc_b, ref_enc_b, atol=1e-5, rtol=1e-5)
    assert jnp.allclose(dec_b, ref_dec_b, atol=1e-5, rtol=1e-5)

    # 3) bf16 HBM I/O (f32 compute in-kernel) — bandwidth-saving path for
    #    v6e/v7x; loose tolerance vs the f32 reference.
    enc_h, dec_h = classic_autoencoder_forward(params, xb, io_dtype=jnp.bfloat16)
    jax.block_until_ready((enc_h, dec_h))
    assert enc_h.dtype == jnp.bfloat16 and dec_h.dtype == jnp.bfloat16
    assert jnp.allclose(enc_h.astype(jnp.float32), ref_enc_b, atol=1e-1, rtol=1e-1)
    assert jnp.allclose(dec_h.astype(jnp.float32), ref_dec_b, atol=1e-1, rtol=1e-1)

    print("KERNEL_OK")
</pallas_src>

<mosaic_0001>
module attributes {stable_mosaic.version = 11 : i64} {
  func.func @kernel(%arg0: i32, %arg1: memref<8x64xf32, #tpu.memory_space<vmem>>, %arg2: memref<64x32xf32, #tpu.memory_space<vmem>>, %arg3: memref<1x32xf32, #tpu.memory_space<vmem>>, %arg4: memref<32x16xf32, #tpu.memory_space<vmem>>, %arg5: memref<1x16xf32, #tpu.memory_space<vmem>>, %arg6: memref<16x32xf32, #tpu.memory_space<vmem>>, %arg7: memref<1x32xf32, #tpu.memory_space<vmem>>, %arg8: memref<32x64xf32, #tpu.memory_space<vmem>>, %arg9: memref<1x64xf32, #tpu.memory_space<vmem>>, %arg10: memref<8x16xf32, #tpu.memory_space<vmem>>, %arg11: memref<8x64xf32, #tpu.memory_space<vmem>>) attributes {dimension_semantics = [#tpu.dimension_semantics<parallel>], iteration_bounds = array<i64: 1>, scalar_prefetch = 0 : i64, scratch_operands = 0 : i64, tpu.core_type = #tpu.core_type<tc>, window_params = [{transform_indices = @transform_0, window_bounds = array<i64: 8, 64>}, {pipeline_mode = #tpu.pipeline_mode<synchronous>, transform_indices = @transform_1, window_bounds = array<i64: 64, 32>}, {pipeline_mode = #tpu.pipeline_mode<synchronous>, transform_indices = @transform_2, window_bounds = array<i64: 1, 32>}, {pipeline_mode = #tpu.pipeline_mode<synchronous>, transform_indices = @transform_3, window_bounds = array<i64: 32, 16>}, {pipeline_mode = #tpu.pipeline_mode<synchronous>, transform_indices = @transform_4, window_bounds = array<i64: 1, 16>}, {pipeline_mode = #tpu.pipeline_mode<synchronous>, transform_indices = @transform_5, window_bounds = array<i64: 16, 32>}, {pipeline_mode = #tpu.pipeline_mode<synchronous>, transform_indices = @transform_6, window_bounds = array<i64: 1, 32>}, {pipeline_mode = #tpu.pipeline_mode<synchronous>, transform_indices = @transform_7, window_bounds = array<i64: 32, 64>}, {pipeline_mode = #tpu.pipeline_mode<synchronous>, transform_indices = @transform_8, window_bounds = array<i64: 1, 64>}, {transform_indices = @transform_9, window_bounds = array<i64: 8, 16>}, {transform_indices = @transform_10, window_bounds = array<i64: 8, 64>}]} {
    %c0 = arith.constant 0 : index
    %c0_0 = arith.constant 0 : index
    %0 = vector.load %arg1[%c0, %c0_0] : memref<8x64xf32, #tpu.memory_space<vmem>>, vector<8x64xf32>
    %c0_1 = arith.constant 0 : index
    %c0_2 = arith.constant 0 : index
    %1 = vector.load %arg2[%c0_1, %c0_2] : memref<64x32xf32, #tpu.memory_space<vmem>>, vector<64x32xf32>
    %c0_3 = arith.constant 0 : index
    %c0_4 = arith.constant 0 : index
    %2 = vector.load %arg3[%c0_3, %c0_4] : memref<1x32xf32, #tpu.memory_space<vmem>>, vector<1x32xf32>
    %cst = arith.constant dense<0.000000e+00> : vector<8x32xf32>
    %3 = tpu.matmul %0, %1, %cst {dimension_numbers = #tpu.dot_dimension_numbers<[1], [0], [0], [1], [0, 0, 1, 1], [], []>} : vector<8x64xf32>, vector<64x32xf32>, vector<8x32xf32> -> vector<8x32xf32>
    %4 = vector.broadcast %2 : vector<1x32xf32> to vector<8x32xf32>
    %5 = arith.addf %3, %4 : vector<8x32xf32>
    %6 = math.tanh %5 : vector<8x32xf32>
    %c0_5 = arith.constant 0 : index
    %c0_6 = arith.constant 0 : index
    %7 = vector.load %arg4[%c0_5, %c0_6] : memref<32x16xf32, #tpu.memory_space<vmem>>, vector<32x16xf32>
    %c0_7 = arith.constant 0 : index
    %c0_8 = arith.constant 0 : index
    %8 = vector.load %arg5[%c0_7, %c0_8] : memref<1x16xf32, #tpu.memory_space<vmem>>, vector<1x16xf32>
    %cst_9 = arith.constant dense<0.000000e+00> : vector<8x16xf32>
    %9 = tpu.matmul %6, %7, %cst_9 {dimension_numbers = #tpu.dot_dimension_numbers<[1], [0], [0], [1], [0, 0, 1, 1], [], []>} : vector<8x32xf32>, vector<32x16xf32>, vector<8x16xf32> -> vector<8x16xf32>
    %10 = vector.broadcast %8 : vector<1x16xf32> to vector<8x16xf32>
    %11 = arith.addf %9, %10 : vector<8x16xf32>
    %12 = math.tanh %11 : vector<8x16xf32>
    %c0_10 = arith.constant 0 : index
    %c0_11 = arith.constant 0 : index
    %13 = vector.load %arg10[%c0_10, %c0_11] : memref<8x16xf32, #tpu.memory_space<vmem>>, vector<8x16xf32>
    tpu.vector_store %arg10[%c0_10, %c0_11], %12 {strides = array<i32>} : memref<8x16xf32, #tpu.memory_space<vmem>>, vector<8x16xf32>,
    %c0_12 = arith.constant 0 : index
    %c0_13 = arith.constant 0 : index
    %14 = vector.load %arg6[%c0_12, %c0_13] : memref<16x32xf32, #tpu.memory_space<vmem>>, vector<16x32xf32>
    %c0_14 = arith.constant 0 : index
    %c0_15 = arith.constant 0 : index
    %15 = vector.load %arg7[%c0_14, %c0_15] : memref<1x32xf32, #tpu.memory_space<vmem>>, vector<1x32xf32>
    %cst_16 = arith.constant dense<0.000000e+00> : vector<8x32xf32>
    %16 = tpu.matmul %12, %14, %cst_16 {dimension_numbers = #tpu.dot_dimension_numbers<[1], [0], [0], [1], [0, 0, 1, 1], [], []>} : vector<8x16xf32>, vector<16x32xf32>, vector<8x32xf32> -> vector<8x32xf32>
    %17 = vector.broadcast %15 : vector<1x32xf32> to vector<8x32xf32>
    %18 = arith.addf %16, %17 : vector<8x32xf32>
    %19 = math.tanh %18 : vector<8x32xf32>
    %c0_17 = arith.constant 0 : index
    %c0_18 = arith.constant 0 : index
    %20 = vector.load %arg8[%c0_17, %c0_18] : memref<32x64xf32, #tpu.memory_space<vmem>>, vector<32x64xf32>
    %c0_19 = arith.constant 0 : index
    %c0_20 = arith.constant 0 : index
    %21 = vector.load %arg9[%c0_19, %c0_20] : memref<1x64xf32, #tpu.memory_space<vmem>>, vector<1x64xf32>
    %cst_21 = arith.constant dense<0.000000e+00> : vector<8x64xf32>
    %22 = tpu.matmul %19, %20, %cst_21 {dimension_numbers = #tpu.dot_dimension_numbers<[1], [0], [0], [1], [0, 0, 1, 1], [], []>} : vector<8x32xf32>, vector<32x64xf32>, vector<8x64xf32> -> vector<8x64xf32>
    %23 = vector.broadcast %21 : vector<1x64xf32> to vector<8x64xf32>
    %24 = arith.addf %22, %23 : vector<8x64xf32>
    %25 = math.tanh %24 : vector<8x64xf32>
    %c0_22 = arith.constant 0 : index
    %c0_23 = arith.constant 0 : index
    %26 = vector.load %arg11[%c0_22, %c0_23] : memref<8x64xf32, #tpu.memory_space<vmem>>, vector<8x64xf32>
    tpu.vector_store %arg11[%c0_22, %c0_23], %25 {strides = array<i32>} : memref<8x64xf32, #tpu.memory_space<vmem>>, vector<8x64xf32>,
    return
  }
  func.func @transform_0(%arg0: i32) -> (i32, i32) {
    %c0_i32 = arith.constant 0 : i32
    %c0_i32_0 = arith.constant 0 : i32
    return %arg0, %c0_i32 : i32, i32
  }
  func.func @transform_1(%arg0: i32) -> (i32, i32) {
    %c0_i32 = arith.constant 0 : i32
    %c0_i32_0 = arith.constant 0 : i32
    %c0_i32_1 = arith.constant 0 : i32
    return %c0_i32, %c0_i32_0 : i32, i32
  }
  func.func @transform_2(%arg0: i32) -> (i32, i32) {
    %c0_i32 = arith.constant 0 : i32
    %c0_i32_0 = arith.constant 0 : i32
    %c0_i32_1 = arith.constant 0 : i32
    return %c0_i32, %c0_i32_0 : i32, i32
  }
  func.func @transform_3(%arg0: i32) -> (i32, i32) {
    %c0_i32 = arith.constant 0 : i32
    %c0_i32_0 = arith.constant 0 : i32
    %c0_i32_1 = arith.constant 0 : i32
    return %c0_i32, %c0_i32_0 : i32, i32
  }
  func.func @transform_4(%arg0: i32) -> (i32, i32) {
    %c0_i32 = arith.constant 0 : i32
    %c0_i32_0 = arith.constant 0 : i32
    %c0_i32_1 = arith.constant 0 : i32
    return %c0_i32, %c0_i32_0 : i32, i32
  }
  func.func @transform_5(%arg0: i32) -> (i32, i32) {
    %c0_i32 = arith.constant 0 : i32
    %c0_i32_0 = arith.constant 0 : i32
    %c0_i32_1 = arith.constant 0 : i32
    return %c0_i32, %c0_i32_0 : i32, i32
  }
  func.func @transform_6(%arg0: i32) -> (i32, i32) {
    %c0_i32 = arith.constant 0 : i32
    %c0_i32_0 = arith.constant 0 : i32
    %c0_i32_1 = arith.constant 0 : i32
    return %c0_i32, %c0_i32_0 : i32, i32
  }
  func.func @transform_7(%arg0: i32) -> (i32, i32) {
    %c0_i32 = arith.constant 0 : i32
    %c0_i32_0 = arith.constant 0 : i32
    %c0_i32_1 = arith.constant 0 : i32
    return %c0_i32, %c0_i32_0 : i32, i32
  }
  func.func @transform_8(%arg0: i32) -> (i32, i32) {
    %c0_i32 = arith.constant 0 : i32
    %c0_i32_0 = arith.constant 0 : i32
    %c0_i32_1 = arith.constant 0 : i32
    return %c0_i32, %c0_i32_0 : i32, i32
  }
  func.func @transform_9(%arg0: i32) -> (i32, i32) {
    %c0_i32 = arith.constant 0 : i32
    %c0_i32_0 = arith.constant 0 : i32
    return %arg0, %c0_i32 : i32, i32
  }
  func.func @transform_10(%arg0: i32) -> (i32, i32) {
    %c0_i32 = arith.constant 0 : i32
    %c0_i32_0 = arith.constant 0 : i32
    return %arg0, %c0_i32 : i32, i32
  }
}

</mosaic_0001>

<llo_original>
// kernel: classic_autoencoder_forward.1
$region0: #{classic_autoencoder_forward.1}
  #allocation0 [shape = 'u32[]', space=smem, size = 0x4, offset = 0x4, fixed_abs, tag = 'smem constant byte address 0x4 - core index']
  #allocation1 [shape = 'u32[144,128]{1,0:T(1,128)}', space=vmem, size = 0x12000, scoped, tag = 'internal scratch']
  %s0 = inlined_call_operand.vmem [shape: f32[8,64], index: 0, kind: input, shape index: {}]
  %s1 = inlined_call_operand.vmem [shape: f32[64,32], index: 1, kind: input, shape index: {}]
  %s2 = inlined_call_operand.vmem [shape: f32[1,32], index: 2, kind: input, shape index: {}]
  %s3 = inlined_call_operand.vmem [shape: f32[32,16], index: 3, kind: input, shape index: {}]
  %s4 = inlined_call_operand.vmem [shape: f32[1,16], index: 4, kind: input, shape index: {}]
  %s5 = inlined_call_operand.vmem [shape: f32[16,32], index: 5, kind: input, shape index: {}]
  %s6 = inlined_call_operand.vmem [shape: f32[1,32], index: 6, kind: input, shape index: {}]
  %s7 = inlined_call_operand.vmem [shape: f32[32,64], index: 7, kind: input, shape index: {}]
  %s8 = inlined_call_operand.vmem [shape: f32[1,64], index: 8, kind: input, shape index: {}]
  %s9 = inlined_call_operand.hbm [shape: f32[8,16], index: 9, kind: output, shape index: {0}]
  %s10 = inlined_call_operand.hbm [shape: f32[8,64], index: 10, kind: output, shape index: {1}]
  %11 = xla_tuple %s9, %s10
  %s12 = sld [smem:[#allocation0]]
  $region54: #{classic_autoencoder_forward.1} parent=0
    _
  %s14 = ssub.s32 1, %s12
  %s15 = scalar_select 0, %s14, %s12
  $region1: #{classic_autoencoder_forward.1} parent=0
    #allocation2 [shape = 'u8[4096]{0}', space=vmem, size = 0x1000, scoped, tag = 'output window, operand 0, single buffered']
    #allocation3 [shape = 's32[1]{0}', space=sflag, size = 0x4, scoped, tag = 'scoped memory for classic_autoencoder_forward.1']
    #allocation4 [shape = 'u8[4096]{0}', space=vmem, size = 0x1000, scoped, tag = 'output window, operand 1, single buffered']
    #allocation5 [shape = 's32[1]{0}', space=sflag, size = 0x4, scoped, tag = 'scoped memory for classic_autoencoder_forward.1']
    %16 = vsyncpa [#allocation3], 0
    %17 = vsyncpa [#allocation5], 0
    // Predicated region
    $region2: #{classic_autoencoder_forward.1} parent=1 // pred_check
      _
    $region3: #{classic_autoencoder_forward.1} parent=1 // pred_check_branch
      %19 = sbr.rel (0) target = $region5
    $region4: #{classic_autoencoder_forward.1} parent=1 // pred_region
      _
    $region5: #{classic_autoencoder_forward.1} parent=1 // pred_fallthru
      _
    // Predicated region
    $region6: #{classic_autoencoder_forward.1} parent=1 // pred_check
      _
    $region7: #{classic_autoencoder_forward.1} parent=1 // pred_check_branch
      %21 = sbr.rel (0) target = $region9
    $region8: #{classic_autoencoder_forward.1} parent=1 // pred_region
      _
    $region9: #{classic_autoencoder_forward.1} parent=1 // pred_fallthru
      _
    // Predicated region
    $region10: #{classic_autoencoder_forward.1} parent=1 // pred_check
      _
    $region11: #{classic_autoencoder_forward.1} parent=1 // pred_check_branch
      %23 = sbr.rel (0) target = $region13
    $region12: #{classic_autoencoder_forward.1} parent=1 // pred_region
      _
    $region13: #{classic_autoencoder_forward.1} parent=1 // pred_fallthru
      _
    // Predicated region
    $region14: #{classic_autoencoder_forward.1} parent=1 // pred_check
      _
    $region15: #{classic_autoencoder_forward.1} parent=1 // pred_check_branch
      %25 = sbr.rel (0) target = $region17
    $region16: #{classic_autoencoder_forward.1} parent=1 // pred_region
      _
    $region17: #{classic_autoencoder_forward.1} parent=1 // pred_fallthru
      _
    // Predicated region
    $region18: #{classic_autoencoder_forward.1} parent=1 // pred_check
      _
    $region19: #{classic_autoencoder_forward.1} parent=1 // pred_check_branch
      %27 = sbr.rel (0) target = $region21
    $region20: #{classic_autoencoder_forward.1} parent=1 // pred_region
      _
    $region21: #{classic_autoencoder_forward.1} parent=1 // pred_fallthru
      _
    // Predicated region
    $region22: #{classic_autoencoder_forward.1} parent=1 // pred_check
      _
    $region23: #{classic_autoencoder_forward.1} parent=1 // pred_check_branch
      %29 = sbr.rel (0) target = $region25
    $region24: #{classic_autoencoder_forward.1} parent=1 // pred_region
      _
    $region25: #{classic_autoencoder_forward.1} parent=1 // pred_fallthru
      _
    // Predicated region
    $region26: #{classic_autoencoder_forward.1} parent=1 // pred_check
      _
    $region27: #{classic_autoencoder_forward.1} parent=1 // pred_check_branch
      %31 = sbr.rel (0) target = $region29
    $region28: #{classic_autoencoder_forward.1} parent=1 // pred_region
      _
    $region29: #{classic_autoencoder_forward.1} parent=1 // pred_fallthru
      _
    // Predicated region
    $region30: #{classic_autoencoder_forward.1} parent=1 // pred_check
      _
    $region31: #{classic_autoencoder_forward.1} parent=1 // pred_check_branch
      %33 = sbr.rel (0) target = $region33
    $region32: #{classic_autoencoder_forward.1} parent=1 // pred_region
      _
    $region33: #{classic_autoencoder_forward.1} parent=1 // pred_fallthru
      _
    // Predicated region
    $region34: #{classic_autoencoder_forward.1} parent=1 // pred_check
      _
    $region35: #{classic_autoencoder_forward.1} parent=1 // pred_check_branch
      %35 = sbr.rel (0) target = $region37
    $region36: #{classic_autoencoder_forward.1} parent=1 // pred_region
      _
    $region37: #{classic_autoencoder_forward.1} parent=1 // pred_fallthru
      _
    %v36 = vld [vmem:[%s0] sm:$0xff]
    %v37 = vld [vmem:[%s1] sm:$0xff]
    %v38 = vld [vmem:[%s1 + $0x8] sm:$0xff]
    %v39 = vld [vmem:[%s1 + $0x10] sm:$0xff]
    %v40 = vld [vmem:[%s1 + $0x18] sm:$0xff]
    %v41 = vld [vmem:[%s1 + $0x20] sm:$0xff]
    %v42 = vld [vmem:[%s1 + $0x28] sm:$0xff]
    %v43 = vld [vmem:[%s1 + $0x30] sm:$0xff]
    %v44 = vld [vmem:[%s1 + $0x38] sm:$0xff]
    %v45 = vld [vmem:[%s2] sm:$0x1]
    %v47 = vlaneseq
    %v48 = vshrl.u32 %v47, 7
    %v49 = vsub.s32 0, %v48
    %v50 = vrot.slane %v45, %v49
    %vm52 = vcmask 523264
    %v54 = vsel %vm52, %v36, 0
    %56 = vmatprep.subr.mxu0 0.0
    %57 = vmatpush1.msra.mxu0 %v37
    %58 = vmatprep.subr.mxu0 0.0
    %59 = vmatpush1.msra.mxu0 %v38
    %60 = vmatprep.subr.mxu0 0.0
    %61 = vmatpush1.msra.mxu0 %v39
    %62 = vmatprep.subr.mxu0 0.0
    %63 = vmatpush1.msra.mxu0 %v40
    %64 = vmatprep.subr.mxu0 0.0
    %65 = vmatpush1.msra.mxu0 %v41
    %66 = vmatprep.subr.mxu0 0.0
    %67 = vmatpush1.msra.mxu0 %v42
    %68 = vmatprep.subr.mxu0 0.0
    %69 = vmatpush1.msra.mxu0 %v43
    %70 = vmatprep.subr.mxu0 0.0
    %71 = vmatpush1.msra.mxu0 %v44
    %72 = vmatprep.subr.mxu0 0.0
    %73 = vmatpush1.msra.mxu0 0.0
    %74 = vmatprep.subr.mxu0 0.0
    %75 = vmatpush1.msra.mxu0 0.0
    %76 = vmatprep.subr.mxu0 0.0
    %77 = vmatpush1.msra.mxu0 0.0
    %78 = vmatprep.subr.mxu0 0.0
    %79 = vmatpush1.msra.mxu0 0.0
    %80 = vmatprep.subr.mxu0 0.0
    %81 = vmatpush1.msra.mxu0 0.0
    %82 = vmatprep.subr.mxu0 0.0
    %83 = vmatpush1.msra.mxu0 0.0
    %84 = vmatprep.subr.mxu0 0.0
    %85 = vmatpush1.msra.mxu0 0.0
    %86 = vmatprep.subr.mxu0 0.0
    %87 = vmatpush1.msra.mxu0 0.0
    %88 = vmatprep.subr.mxu0 0.0
    %89 = vmatpush1.msra.mxu0 0.0
    %90 = vmatprep.subr.mxu0 0.0
    %91 = vmatpush1.msra.mxu0 0.0
    %92 = vmatprep.subr.mxu0 0.0
    %93 = vmatpush1.msra.mxu0 0.0
    %94 = vmatprep.subr.mxu0 0.0
    %95 = vmatpush1.msra.mxu0 0.0
    %96 = vmatprep.subr.mxu0 0.0
    %97 = vmatpush1.msra.mxu0 0.0
    %98 = vmatprep.subr.mxu0 0.0
    %99 = vmatpush1.msra.mxu0 0.0
    %100 = vmatprep.subr.mxu0 0.0
    %101 = vmatpush1.msra.mxu0 0.0
    %102 = vmatprep.subr.mxu0 0.0
    %103 = vmatpush1.msra.mxu0 0.0
    %104 = vmatprep.subr.mxu0 0.0
    %105 = vmatpush1.msra.mxu0 0.0
    %106 = vmatprep.subr.mxu0 0.0
    %107 = vmatpush1.msra.mxu0 0.0
    %108 = vmatprep.subr.mxu0 0.0
    %109 = vmatpush1.msra.mxu0 0.0
    %110 = vmatprep.subr.mxu0 0.0
    %111 = vmatpush1.msra.mxu0 0.0
    %112 = vmatprep.subr.mxu0 0.0
    %113 = vmatpush1.msra.mxu0 0.0
    %114 = vmatprep.subr.mxu0 0.0
    %115 = vmatpush1.msra.mxu0 0.0
    %116 = vmatprep.subr.mxu0 0.0
    %117 = vmatpush1.msra.mxu0 0.0
    %118 = vmatprep.subr.mxu0 0.0
    %119 = vmatpush1.msra.mxu0 0.0
    %120 = vmatprep.mubr.f32.mxu0 0.0
    %121 = vmatmul.mubr.f32.gmra.mrb[0].mxu0 %v54
    %v122 = vpop.f32.mrb[0].mxu0
    %v123 = vadd.f32 %v50, %v122
    %v124 = vpop.f32.mrb[0].mxu0
    %125 = vdwg.mxu0
    %v126 = vtanh.pop %v123
    %v127 = vld [vmem:[%s3] sm:$0xff]
    %v128 = vld [vmem:[%s3 + $0x8] sm:$0xff]
    %v129 = vld [vmem:[%s3 + $0x10] sm:$0xff]
    %v130 = vld [vmem:[%s3 + $0x18] sm:$0xff]
    %v131 = vld [vmem:[%s4] sm:$0x1]
    %v133 = vlaneseq
    %v134 = vshrl.u32 %v133, 7
    %v135 = vsub.s32 0, %v134
    %v136 = vrot.slane %v131, %v135
    %vm138 = vcmask 261120
    %v140 = vsel %vm138, %v126, 0
    %142 = vmatprep.subr.mxu0 0.0
    %143 = vmatpush1.msra.mxu0 %v127
    %144 = vmatprep.subr.mxu0 0.0
    %145 = vmatpush1.msra.mxu0 %v128
    %146 = vmatprep.subr.mxu0 0.0
    %147 = vmatpush1.msra.mxu0 %v129
    %148 = vmatprep.subr.mxu0 0.0
    %149 = vmatpush1.msra.mxu0 %v130
    %150 = vmatprep.subr.mxu0 0.0
    %151 = vmatpush1.msra.mxu0 0.0
    %152 = vmatprep.subr.mxu0 0.0
    %153 = vmatpush1.msra.mxu0 0.0
    %154 = vmatprep.subr.mxu0 0.0
    %155 = vmatpush1.msra.mxu0 0.0
    %156 = vmatprep.subr.mxu0 0.0
    %157 = vmatpush1.msra.mxu0 0.0
    %158 = vmatprep.subr.mxu0 0.0
    %159 = vmatpush1.msra.mxu0 0.0
    %160 = vmatprep.subr.mxu0 0.0
    %161 = vmatpush1.msra.mxu0 0.0
    %162 = vmatprep.subr.mxu0 0.0
    %163 = vmatpush1.msra.mxu0 0.0
    %164 = vmatprep.subr.mxu0 0.0
    %165 = vmatpush1.msra.mxu0 0.0
    %166 = vmatprep.subr.mxu0 0.0
    %167 = vmatpush1.msra.mxu0 0.0
    %168 = vmatprep.subr.mxu0 0.0
    %169 = vmatpush1.msra.mxu0 0.0
    %170 = vmatprep.subr.mxu0 0.0
    %171 = vmatpush1.msra.mxu0 0.0
    %172 = vmatprep.subr.mxu0 0.0
    %173 = vmatpush1.msra.mxu0 0.0
    %174 = vmatprep.subr.mxu0 0.0
    %175 = vmatpush1.msra.mxu0 0.0
    %176 = vmatprep.subr.mxu0 0.0
    %177 = vmatpush1.msra.mxu0 0.0
    %178 = vmatprep.subr.mxu0 0.0
    %179 = vmatpush1.msra.mxu0 0.0
    %180 = vmatprep.subr.mxu0 0.0
    %181 = vmatpush1.msra.mxu0 0.0
    %182 = vmatprep.subr.mxu0 0.0
    %183 = vmatpush1.msra.mxu0 0.0
    %184 = vmatprep.subr.mxu0 0.0
    %185 = vmatpush1.msra.mxu0 0.0
    %186 = vmatprep.subr.mxu0 0.0
    %187 = vmatpush1.msra.mxu0 0.0
    %188 = vmatprep.subr.mxu0 0.0
    %189 = vmatpush1.msra.mxu0 0.0
    %190 = vmatprep.subr.mxu0 0.0
    %191 = vmatpush1.msra.mxu0 0.0
    %192 = vmatprep.subr.mxu0 0.0
    %193 = vmatpush1.msra.mxu0 0.0
    %194 = vmatprep.subr.mxu0 0.0
    %195 = vmatpush1.msra.mxu0 0.0
    %196 = vmatprep.subr.mxu0 0.0
    %197 = vmatpush1.msra.mxu0 0.0
    %198 = vmatprep.subr.mxu0 0.0
    %199 = vmatpush1.msra.mxu0 0.0
    %200 = vmatprep.subr.mxu0 0.0
    %201 = vmatpush1.msra.mxu0 0.0
    %202 = vmatprep.subr.mxu0 0.0
    %203 = vmatpush1.msra.mxu0 0.0
    %204 = vmatprep.subr.mxu0 0.0
    %205 = vmatpush1.msra.mxu0 0.0
    %206 = vmatprep.mubr.f32.mxu0 0.0
    %207 = vmatmul.mubr.f32.gmra.mrb[0].mxu0 %v140
    %v208 = vpop.f32.mrb[0].mxu0
    %v209 = vadd.f32 %v136, %v208
    %v210 = vpop.f32.mrb[0].mxu0
    %211 = vdwg.mxu0
    %v212 = vtanh.pop %v209
    %vm213 = vcmask 130048
    %214 = vst.msk [vmem:[#allocation2] sm:$0xff] %vm213, %v212
    %v215 = vld [vmem:[%s5] sm:$0xff]
    %v216 = vld [vmem:[%s5 + $0x8] sm:$0xff]
    %v217 = vld [vmem:[%s6] sm:$0x1]
    %v219 = vlaneseq
    %v220 = vshrl.u32 %v219, 7
    %v221 = vsub.s32 0, %v220
    %v222 = vrot.slane %v217, %v221
    %v225 = vsel %vm213, %v212, 0
    %227 = vmatprep.subr.mxu0 0.0
    %228 = vmatpush1.msra.mxu0 %v215
    %229 = vmatprep.subr.mxu0 0.0
    %230 = vmatpush1.msra.mxu0 %v216
    %231 = vmatprep.subr.mxu0 0.0
    %232 = vmatpush1.msra.mxu0 0.0
    %233 = vmatprep.subr.mxu0 0.0
    %234 = vmatpush1.msra.mxu0 0.0
    %235 = vmatprep.subr.mxu0 0.0
    %236 = vmatpush1.msra.mxu0 0.0
    %237 = vmatprep.subr.mxu0 0.0
    %238 = vmatpush1.msra.mxu0 0.0
    %239 = vmatprep.subr.mxu0 0.0
    %240 = vmatpush1.msra.mxu0 0.0
    %241 = vmatprep.subr.mxu0 0.0
    %242 = vmatpush1.msra.mxu0 0.0
    %243 = vmatprep.subr.mxu0 0.0
    %244 = vmatpush1.msra.mxu0 0.0
    %245 = vmatprep.subr.mxu0 0.0
    %246 = vmatpush1.msra.mxu0 0.0
    %247 = vmatprep.subr.mxu0 0.0
    %248 = vmatpush1.msra.mxu0 0.0
    %249 = vmatprep.subr.mxu0 0.0
    %250 = vmatpush1.msra.mxu0 0.0
    %251 = vmatprep.subr.mxu0 0.0
    %252 = vmatpush1.msra.mxu0 0.0
    %253 = vmatprep.subr.mxu0 0.0
    %254 = vmatpush1.msra.mxu0 0.0
    %255 = vmatprep.subr.mxu0 0.0
    %256 = vmatpush1.msra.mxu0 0.0
    %257 = vmatprep.subr.mxu0 0.0
    %258 = vmatpush1.msra.mxu0 0.0
    %259 = vmatprep.subr.mxu0 0.0
    %260 = vmatpush1.msra.mxu0 0.0
    %261 = vmatprep.subr.mxu0 0.0
    %262 = vmatpush1.msra.mxu0 0.0
    %263 = vmatprep.subr.mxu0 0.0
    %264 = vmatpush1.msra.mxu0 0.0
    %265 = vmatprep.subr.mxu0 0.0
    %266 = vmatpush1.msra.mxu0 0.0
    %267 = vmatprep.subr.mxu0 0.0
    %268 = vmatpush1.msra.mxu0 0.0
    %269 = vmatprep.subr.mxu0 0.0
    %270 = vmatpush1.msra.mxu0 0.0
    %271 = vmatprep.subr.mxu0 0.0
    %272 = vmatpush1.msra.mxu0 0.0
    %273 = vmatprep.subr.mxu0 0.0
    %274 = vmatpush1.msra.mxu0 0.0
    %275 = vmatprep.subr.mxu0 0.0
    %276 = vmatpush1.msra.mxu0 0.0
    %277 = vmatprep.subr.mxu0 0.0
    %278 = vmatpush1.msra.mxu0 0.0
    %279 = vmatprep.subr.mxu0 0.0
    %280 = vmatpush1.msra.mxu0 0.0
    %281 = vmatprep.subr.mxu0 0.0
    %282 = vmatpush1.msra.mxu0 0.0
    %283 = vmatprep.subr.mxu0 0.0
    %284 = vmatpush1.msra.mxu0 0.0
    %285 = vmatprep.subr.mxu0 0.0
    %286 = vmatpush1.msra.mxu0 0.0
    %287 = vmatprep.subr.mxu0 0.0
    %288 = vmatpush1.msra.mxu0 0.0
    %289 = vmatprep.subr.mxu0 0.0
    %290 = vmatpush1.msra.mxu0 0.0
    %291 = vmatprep.mubr.f32.mxu0 0.0
    %292 = vmatmul.mubr.f32.gmra.mrb[0].mxu0 %v225
    %v293 = vpop.f32.mrb[0].mxu0
    %v294 = vadd.f32 %v222, %v293
    %v295 = vpop.f32.mrb[0].mxu0
    %296 = vdwg.mxu0
    %v297 = vtanh.pop %v294
    %v298 = vld [vmem:[%s7] sm:$0xff]
    %v299 = vld [vmem:[%s7 + $0x8] sm:$0xff]
    %v300 = vld [vmem:[%s7 + $0x10] sm:$0xff]
    %v301 = vld [vmem:[%s7 + $0x18] sm:$0xff]
    %v302 = vld [vmem:[%s8] sm:$0x1]
    %v304 = vlaneseq
    %v305 = vshrl.u32 %v304, 7
    %v306 = vsub.s32 0, %v305
    %v307 = vrot.slane %v302, %v306
    %v310 = vsel %vm138, %v297, 0
    %312 = vmatprep.subr.mxu0 0.0
    %313 = vmatpush1.msra.mxu0 %v298
    %314 = vmatprep.subr.mxu0 0.0
    %315 = vmatpush1.msra.mxu0 %v299
    %316 = vmatprep.subr.mxu0 0.0
    %317 = vmatpush1.msra.mxu0 %v300
    %318 = vmatprep.subr.mxu0 0.0
    %319 = vmatpush1.msra.mxu0 %v301
    %320 = vmatprep.subr.mxu0 0.0
    %321 = vmatpush1.msra.mxu0 0.0
    %322 = vmatprep.subr.mxu0 0.0
    %323 = vmatpush1.msra.mxu0 0.0
    %324 = vmatprep.subr.mxu0 0.0
    %325 = vmatpush1.msra.mxu0 0.0
    %326 = vmatprep.subr.mxu0 0.0
    %327 = vmatpush1.msra.mxu0 0.0
    %328 = vmatprep.subr.mxu0 0.0
    %329 = vmatpush1.msra.mxu0 0.0
    %330 = vmatprep.subr.mxu0 0.0
    %331 = vmatpush1.msra.mxu0 0.0
    %332 = vmatprep.subr.mxu0 0.0
    %333 = vmatpush1.msra.mxu0 0.0
    %334 = vmatprep.subr.mxu0 0.0
    %335 = vmatpush1.msra.mxu0 0.0
    %336 = vmatprep.subr.mxu0 0.0
    %337 = vmatpush1.msra.mxu0 0.0
    %338 = vmatprep.subr.mxu0 0.0
    %339 = vmatpush1.msra.mxu0 0.0
    %340 = vmatprep.subr.mxu0 0.0
    %341 = vmatpush1.msra.mxu0 0.0
    %342 = vmatprep.subr.mxu0 0.0
    %343 = vmatpush1.msra.mxu0 0.0
    %344 = vmatprep.subr.mxu0 0.0
    %345 = vmatpush1.msra.mxu0 0.0
    %346 = vmatprep.subr.mxu0 0.0
    %347 = vmatpush1.msra.mxu0 0.0
    %348 = vmatprep.subr.mxu0 0.0
    %349 = vmatpush1.msra.mxu0 0.0
    %350 = vmatprep.subr.mxu0 0.0
    %351 = vmatpush1.msra.mxu0 0.0
    %352 = vmatprep.subr.mxu0 0.0
    %353 = vmatpush1.msra.mxu0 0.0
    %354 = vmatprep.subr.mxu0 0.0
    %355 = vmatpush1.msra.mxu0 0.0
    %356 = vmatprep.subr.mxu0 0.0
    %357 = vmatpush1.msra.mxu0 0.0
    %358 = vmatprep.subr.mxu0 0.0
    %359 = vmatpush1.msra.mxu0 0.0
    %360 = vmatprep.subr.mxu0 0.0
    %361 = vmatpush1.msra.mxu0 0.0
    %362 = vmatprep.subr.mxu0 0.0
    %363 = vmatpush1.msra.mxu0 0.0
    %364 = vmatprep.subr.mxu0 0.0
    %365 = vmatpush1.msra.mxu0 0.0
    %366 = vmatprep.subr.mxu0 0.0
    %367 = vmatpush1.msra.mxu0 0.0
    %368 = vmatprep.subr.mxu0 0.0
    %369 = vmatpush1.msra.mxu0 0.0
    %370 = vmatprep.subr.mxu0 0.0
    %371 = vmatpush1.msra.mxu0 0.0
    %372 = vmatprep.subr.mxu0 0.0
    %373 = vmatpush1.msra.mxu0 0.0
    %374 = vmatprep.subr.mxu0 0.0
    %375 = vmatpush1.msra.mxu0 0.0
    %376 = vmatprep.mubr.f32.mxu0 0.0
    %377 = vmatmul.mubr.f32.gmra.mrb[0].mxu0 %v310
    %v378 = vpop.f32.mrb[0].mxu0
    %v379 = vadd.f32 %v307, %v378
    %v380 = vpop.f32.mrb[0].mxu0
    %381 = vdwg.mxu0
    %v382 = vtanh.pop %v379
    %383 = vst.msk [vmem:[#allocation4] sm:$0xff] %vm52, %v382
    // Predicated region
    $region38: #{classic_autoencoder_forward.1} parent=1 // pred_check
      _
    $region39: #{classic_autoencoder_forward.1} parent=1 // pred_check_branch
      %385 = sbr.rel (0) target = $region41
    $region40: #{classic_autoencoder_forward.1} parent=1 // pred_region
      %s387 = ssub.s32 128, 128
      %388 = vsyncadd [#allocation3], %s387
      %s390 = sshll.u32 [#allocation2], 4
      %s391 = int_to_ptr.vmem [resolvable:$true] %s390
      %393 = dma.vmem_to_hbm [thread:$0]  %s391, 128, %s9, [#allocation3]
    $region41: #{classic_autoencoder_forward.1} parent=1 // pred_fallthru
      _
    // Predicated region
    $region42: #{classic_autoencoder_forward.1} parent=1 // pred_check
      _
    $region43: #{classic_autoencoder_forward.1} parent=1 // pred_check_branch
      %395 = sbr.rel (0) target = $region45
    $region44: #{classic_autoencoder_forward.1} parent=1 // pred_region
      %s397 = ssub.s32 128, 128
      %398 = vsyncadd [#allocation5], %s397
      %s400 = sshll.u32 [#allocation4], 4
      %s401 = int_to_ptr.vmem [resolvable:$true] %s400
      %403 = dma.vmem_to_hbm [thread:$0]  %s401, 128, %s10, [#allocation5]
    $region45: #{classic_autoencoder_forward.1} parent=1 // pred_fallthru
      _
    // Predicated region
    $region46: #{classic_autoencoder_forward.1} parent=1 // pred_check
      _
    $region47: #{classic_autoencoder_forward.1} parent=1 // pred_check_branch
      %405 = sbr.rel (0) target = $region49
    $region48: #{classic_autoencoder_forward.1} parent=1 // pred_region
      %406 = dma.done [#allocation3], 128
    $region49: #{classic_autoencoder_forward.1} parent=1 // pred_fallthru
      _
    // Predicated region
    $region50: #{classic_autoencoder_forward.1} parent=1 // pred_check
      _
    $region51: #{classic_autoencoder_forward.1} parent=1 // pred_check_branch
      %408 = sbr.rel (0) target = $region53
    $region52: #{classic_autoencoder_forward.1} parent=1 // pred_region
      %409 = dma.done [#allocation5], 128
    $region53: #{classic_autoencoder_forward.1} parent=1 // pred_fallthru
      _
    %410 = vsyncpa [#allocation3], 1
    %411 = vsyncpa [#allocation5], 1

</llo_original>
